<compile_context>
chip_gen: v7x
topology: tpu7x:2x2x1
jax: 0.10.0
libtpu: 0.0.40
codegen_flags: <defaults>
</compile_context>

<pallas_src>
import functools

import jax
import jax.numpy as jnp
from jax.experimental import pallas as pl
from jax.experimental.pallas import tpu as pltpu

_VMEM_LIMIT = 32 * 1024 * 1024  # safe on v5e (128 MiB phys) and v7x (64 MiB phys)


def _round_up(x, m):
    return (x + m - 1) // m * m


def _pad_axis(x, mult, axis):
    pad = (-x.shape[axis]) % mult
    if pad == 0:
        return x
    widths = [(0, 0)] * x.ndim
    widths[axis] = (0, pad)
    return jnp.pad(x, widths)


# ----------------------------------------------------------------------------
# Pallas kernels
# ----------------------------------------------------------------------------

def _fused_matmul_kernel(*refs, apply_relu, has_residual):
    """out = [relu]( a @ w_folded + shift [+ residual] ); f32 accumulation."""
    if has_residual:
        a_ref, w_ref, shift_ref, res_ref, o_ref = refs
    else:
        a_ref, w_ref, shift_ref, o_ref = refs
        res_ref = None
    acc = jnp.dot(a_ref[...], w_ref[...], preferred_element_type=jnp.float32)
    acc = acc + shift_ref[...]
    if res_ref is not None:
        acc = acc + res_ref[...].astype(jnp.float32)
    if apply_relu:
        acc = jnp.maximum(acc, 0.0)
    o_ref[...] = acc.astype(o_ref.dtype)


def _direct_conv3x3_kernel(x_ref, w_ref, shift_ref, o_ref, *, H, W, C):
    """3x3 / stride-1 / pad-1 conv (+folded BN shift, +ReLU) for one image.

    The padded (H+2, W+2, C) slab lives in VMEM; the 9 taps are sliced from it
    and accumulated into an f32 value — no im2col patch tensor ever hits HBM.
    """
    x = x_ref[0]                                        # (H+2, W+2, C) bf16
    n = o_ref.shape[-1]
    acc = jnp.broadcast_to(shift_ref[...], (H * W, n)).astype(jnp.float32)
    t = 0
    for dy in range(3):
        for dx in range(3):
            a = x[dy:dy + H, dx:dx + W, :].reshape(H * W, C)
            acc = acc + jnp.dot(a, w_ref[t * C:(t + 1) * C, :],
                                preferred_element_type=jnp.float32)
            t += 1
    acc = jnp.maximum(acc, 0.0)
    o_ref[...] = acc.reshape(1, H, W, n).astype(o_ref.dtype)


# ----------------------------------------------------------------------------
# Pallas wrappers
# ----------------------------------------------------------------------------

@functools.partial(jax.jit, static_argnames=("apply_relu", "n_out", "out_dtype"))
def fused_matmul(a, w_p, shift_p, residual=None, *, apply_relu, n_out,
                 out_dtype=jnp.bfloat16):
    """a: (M, K) @ prepped w_p: (Kp, Np) bf16; + shift (+residual, +ReLU)."""
    M, K = a.shape
    Kp, Np = w_p.shape

    a_p = a.astype(jnp.bfloat16)
    if Kp != K:                      # only the 7x7 stem needs K padding
        a_p = jnp.pad(a_p, ((0, 0), (0, Kp - K)))

    # Tile sizing: large tiles amortize the ~0.35us/step overhead; cap so the
    # worst residency (2x weight + 2x act tile + 2x out tile) stays well under
    # the 32 MiB scoped-VMEM budget.  If one tile would cover all rows, split
    # in two so both v7x TensorCores get a grid step.
    weight_bytes = Kp * Np * 2
    cap = 512 if weight_bytes <= (2 << 20) else 256
    tm = min(cap, _round_up(M, 8))
    if _round_up(M, tm) == tm and tm >= 16:
        tm = _round_up(tm // 2, 8)
    Mp = _round_up(M, tm)
    if Mp != M:
        a_p = jnp.pad(a_p, ((0, Mp - M), (0, 0)))

    in_specs = [
        pl.BlockSpec((tm, Kp), lambda i: (i, 0)),    # activations: streamed
        pl.BlockSpec((Kp, Np), lambda i: (0, 0)),    # folded weight: resident
        pl.BlockSpec((1, Np), lambda i: (0, 0)),     # BN shift / bias: resident
    ]
    args = [a_p, w_p, shift_p]
    has_residual = residual is not None
    if has_residual:
        r = residual.astype(jnp.bfloat16)
        pr, pc = Mp - M, Np - r.shape[1]
        if pr or pc:
            r = jnp.pad(r, ((0, pr), (0, pc)))
        in_specs.append(pl.BlockSpec((tm, Np), lambda i: (i, 0)))
        args.append(r)

    out_bytes = Mp * Np * jnp.dtype(out_dtype).itemsize
    bytes_accessed = (Mp * Kp * 2 + Kp * Np * 2 + Np * 4
                      + (Mp * Np * 2 if has_residual else 0) + out_bytes)

    out = pl.pallas_call(
        functools.partial(_fused_matmul_kernel, apply_relu=apply_relu,
                          has_residual=has_residual),
        out_shape=jax.ShapeDtypeStruct((Mp, Np), out_dtype),
        grid=(Mp // tm,),
        in_specs=in_specs,
        out_specs=pl.BlockSpec((tm, Np), lambda i: (i, 0)),
        compiler_params=pltpu.CompilerParams(
            dimension_semantics=("parallel",),
            vmem_limit_bytes=_VMEM_LIMIT),
        cost_estimate=pl.CostEstimate(flops=int(2 * Mp * Kp * Np),
                                      transcendentals=0,
                                      bytes_accessed=int(bytes_accessed)),
    )(*args)
    return out[:M, :n_out]


@jax.jit
def direct_conv3x3(x, w_p, shift_p):
    """3x3 / stride-1 / pad-1 conv + folded BN + ReLU, no im2col in HBM."""
    B, H, W, C = x.shape
    Kp, Np = w_p.shape                      # Kp == 9 * C
    x_pad = jnp.pad(x.astype(jnp.bfloat16), ((0, 0), (1, 1), (1, 1), (0, 0)))
    Hp, Wp = H + 2, W + 2

    flops = int(2 * B * H * W * Kp * Np)
    bytes_accessed = int(x_pad.size * 2 + w_p.size * 2 + shift_p.size * 4
                         + B * H * W * Np * 2)

    return pl.pallas_call(
        functools.partial(_direct_conv3x3_kernel, H=H, W=W, C=C),
        out_shape=jax.ShapeDtypeStruct((B, H, W, Np), jnp.bfloat16),
        grid=(B,),
        in_specs=[
            pl.BlockSpec((1, Hp, Wp, C), lambda b: (b, 0, 0, 0)),
            pl.BlockSpec((Kp, Np), lambda b: (0, 0)),     # weight: resident
            pl.BlockSpec((1, Np), lambda b: (0, 0)),      # shift: resident
        ],
        out_specs=pl.BlockSpec((1, H, W, Np), lambda b: (b, 0, 0, 0)),
        compiler_params=pltpu.CompilerParams(
            dimension_semantics=("parallel",),
            vmem_limit_bytes=_VMEM_LIMIT),
        cost_estimate=pl.CostEstimate(flops=flops, transcendentals=0,
                                      bytes_accessed=bytes_accessed),
    )(x_pad, w_p, shift_p)


@jax.jit
def maxpool_3x3_s2(x):
    """MaxPool2d(kernel=3, stride=2, padding=1) on NHWC: fused maximum tree."""
    B, H, W, C = x.shape
    s, k, p = 2, 3, 1
    Ho = (H + 2 * p - k) // s + 1
    Wo = (W + 2 * p - k) // s + 1
    x_p = jnp.pad(x, ((0, 0), (p, p), (p, p), (0, 0)),
                  constant_values=-jnp.inf)
    out = None
    for dy in range(k):
        for dx in range(k):
            v = x_p[:, dy:dy + s * Ho:s, dx:dx + s * Wo:s, :]
            out = v if out is None else jnp.maximum(out, v)
    return out


# ----------------------------------------------------------------------------
# Conv glue (im2col only for the 7x7 stem and the three stride-2 3x3 convs)
# ----------------------------------------------------------------------------

def _extract_patches(x, kh, kw, stride, padding):
    B, H, W, C = x.shape
    x_p = jnp.pad(x, ((0, 0), (padding, padding), (padding, padding), (0, 0)))
    Ho = (H + 2 * padding - kh) // stride + 1
    Wo = (W + 2 * padding - kw) // stride + 1
    cols = []
    for dy in range(kh):
        for dx in range(kw):
            cols.append(x_p[:, dy:dy + stride * Ho:stride,
                            dx:dx + stride * Wo:stride, :])
    return jnp.concatenate(cols, axis=-1), Ho, Wo   # (B, Ho, Wo, kh*kw*C)


def conv_bn(x, p, residual=None, *, stride=1, padding=0, relu=True):
    """Bias-free conv with folded eval-mode BN (+residual, +ReLU)."""
    k, cin, cout = p["k"], p["cin"], p["cout"]
    B = x.shape[0]

    if k == 3 and stride == 1 and padding == 1 and residual is None and relu:
        out = direct_conv3x3(x, p["w"], p["shift"])
        return out[..., :cout] if out.shape[-1] != cout else out

    if k == 1 and padding == 0:
        if stride > 1:
            x = x[:, ::stride, ::stride, :]
        _, Ho, Wo, _ = x.shape
        a = x.reshape(B * Ho * Wo, cin)
    else:
        # TODO(synk): stem 7x7/s2 and stride-2 3x3 convs still go through an
        # im2col patch tensor; a manual-DMA strided-tap kernel would remove it.
        patches, Ho, Wo = _extract_patches(x, k, k, stride, padding)
        a = patches.reshape(B * Ho * Wo, k * k * cin)

    res = residual.reshape(B * Ho * Wo, cout) if residual is not None else None
    out = fused_matmul(a, p["w"], p["shift"], res, apply_relu=relu, n_out=cout)
    return out.reshape(B, Ho, Wo, cout)


# ----------------------------------------------------------------------------
# ResNet-50 structure + parameters (deterministic synthetic init)
# ----------------------------------------------------------------------------

_LAYER_CFG = [  # (planes, num_blocks, stride)
    (64, 3, 1),
    (128, 4, 2),
    (256, 6, 2),
    (512, 3, 2),
]


def make_params(key, output_dim=512):
    keys = iter(jax.random.split(key, 512))

    def conv_w(cout, cin, kh, kw):
        fan_in = cin * kh * kw
        return (jax.random.normal(next(keys), (cout, cin, kh, kw), jnp.float32)
                / jnp.sqrt(float(fan_in)))

    def bn_p(c):
        g = 1.0 + 0.1 * jax.random.normal(next(keys), (c,), jnp.float32)
        b = 0.1 * jax.random.normal(next(keys), (c,), jnp.float32)
        m = 0.1 * jax.random.normal(next(keys), (c,), jnp.float32)
        v = 1.0 + 0.1 * jax.random.uniform(next(keys), (c,), jnp.float32)
        return (g, b, m, v)

    params = {"conv1": conv_w(64, 3, 7, 7), "bn1": bn_p(64)}
    inplanes = 64
    for li, (planes, n_blocks, stride) in enumerate(_LAYER_CFG, start=1):
        blocks = []
        for bi in range(n_blocks):
            s = stride if bi == 0 else 1
            p = {
                "conv1": conv_w(planes, inplanes, 1, 1), "bn1": bn_p(planes),
                "conv2": conv_w(planes, planes, 3, 3), "bn2": bn_p(planes),
                "conv3": conv_w(planes * 4, planes, 1, 1), "bn3": bn_p(planes * 4),
                "stride": s,
            }
            if s != 1 or inplanes != planes * 4:
                p["down_conv"] = conv_w(planes * 4, inplanes, 1, 1)
                p["down_bn"] = bn_p(planes * 4)
            blocks.append(p)
            inplanes = planes * 4
        params[f"layer{li}"] = blocks

    params["fc1_w"] = (jax.random.normal(next(keys), (2048, 1024), jnp.float32)
                       / jnp.sqrt(2048.0))
    params["fc1_b"] = 0.01 * jax.random.normal(next(keys), (1024,), jnp.float32)
    params["fc2_w"] = (jax.random.normal(next(keys), (1024, output_dim),
                                         jnp.float32) / jnp.sqrt(1024.0))
    params["fc2_b"] = 0.01 * jax.random.normal(next(keys), (output_dim,),
                                               jnp.float32)
    return params


def _prep_conv(w, bn):
    """Fold BN scale into the (K, N) GEMM weight; bf16 + pre-padded (one-time)."""
    gamma, beta, mean, var = bn
    scale = gamma * jax.lax.rsqrt(var + 1e-5)
    shift = beta - mean * scale
    cout, cin, kh, kw = w.shape
    wm = jnp.transpose(w, (2, 3, 1, 0)).reshape(kh * kw * cin, cout)
    wm = wm * scale[None, :]                                    # fold in f32
    wm = _pad_axis(_pad_axis(wm, 16, 0).astype(jnp.bfloat16), 128, 1)
    sh = _pad_axis(shift.reshape(1, -1).astype(jnp.float32), 128, 1)
    return {"w": wm, "shift": sh, "k": kh, "cin": cin, "cout": cout}


def _prep_fc(w, b):
    wm = _pad_axis(_pad_axis(w, 16, 0).astype(jnp.bfloat16), 128, 1)
    sh = _pad_axis(b.reshape(1, -1).astype(jnp.float32), 128, 1)
    return {"w": wm, "shift": sh, "cout": int(b.shape[0])}


def prepare_params(params):
    prepped = {"stem": _prep_conv(params["conv1"], params["bn1"])}
    for li in range(1, 5):
        blocks = []
        for p in params[f"layer{li}"]:
            b = {"conv1": _prep_conv(p["conv1"], p["bn1"]),
                 "conv2": _prep_conv(p["conv2"], p["bn2"]),
                 "conv3": _prep_conv(p["conv3"], p["bn3"]),
                 "stride": p["stride"]}
            if "down_conv" in p:
                b["down"] = _prep_conv(p["down_conv"], p["down_bn"])
            blocks.append(b)
        prepped[f"layer{li}"] = blocks
    prepped["fc1"] = _prep_fc(params["fc1_w"], params["fc1_b"])
    prepped["fc2"] = _prep_fc(params["fc2_w"], params["fc2_b"])
    return prepped


def bottleneck_forward(x, p):
    s = p["stride"]
    out = conv_bn(x, p["conv1"], stride=1, padding=0, relu=True)
    out = conv_bn(out, p["conv2"], stride=s, padding=1, relu=True)
    if "down" in p:
        identity = conv_bn(x, p["down"], stride=s, padding=0, relu=False)
    else:
        identity = x
    # conv3 + bn3 + residual add + ReLU fused into one matmul epilogue.
    return conv_bn(out, p["conv3"], residual=identity,
                   stride=1, padding=0, relu=True)


def crow_resnet_embedder_forward(x_nchw, prepped):
    """Mirrors CrowResNetEmbedder.forward (inference semantics)."""
    if x_nchw.ndim != 4:
        raise ValueError(
            f"Expected 4D input (batch, channels, height, width), "
            f"got {x_nchw.ndim}D")
    if x_nchw.shape[1] != 3:
        raise ValueError(f"Expected 3 input channels, got {x_nchw.shape[1]}")

    # NCHW -> NHWC, bf16 activations (channels on the 128-wide lane axis).
    x = jnp.transpose(x_nchw, (0, 2, 3, 1)).astype(jnp.bfloat16)

    # Stem: 7x7/s2 conv + BN + ReLU (fused GEMM), then 3x3/s2 max-pool.
    x = conv_bn(x, prepped["stem"], stride=2, padding=3, relu=True)
    x = maxpool_3x3_s2(x)

    # Residual stages.
    for li in range(1, 5):
        for blk in prepped[f"layer{li}"]:
            x = bottleneck_forward(x, blk)

    # AdaptiveAvgPool2d(1) + flatten (plain XLA reduction, per perf review).
    feat = jnp.mean(x.astype(jnp.float32), axis=(1, 2))        # (B, 2048)

    # fc head: Linear -> ReLU -> Dropout(eval: identity) -> Linear.
    h = fused_matmul(feat.astype(jnp.bfloat16), prepped["fc1"]["w"],
                     prepped["fc1"]["shift"], apply_relu=True,
                     n_out=prepped["fc1"]["cout"])
    out = fused_matmul(h, prepped["fc2"]["w"], prepped["fc2"]["shift"],
                       apply_relu=False, n_out=prepped["fc2"]["cout"],
                       out_dtype=jnp.float32)
    return out


# ----------------------------------------------------------------------------
# Main
# ----------------------------------------------------------------------------

if __name__ == "__main__":
    key = jax.random.PRNGKey(0)
    k_param, k_input = jax.random.split(key)

    params = make_params(k_param, output_dim=512)
    prepped = prepare_params(params)          # one-time weight prep (folded BN)

    x = jax.random.normal(k_input, (2, 3, 64, 64), jnp.float32)  # NCHW input

    out = crow_resnet_embedder_forward(x, prepped)
    out = jax.block_until_ready(out)

    assert out.shape == (2, 512), out.shape
    assert bool(jnp.all(jnp.isfinite(out)))
    print("KERNEL_OK")
</pallas_src>

<mosaic_0001>
module attributes {stable_mosaic.version = 11 : i64} {
  func.func @_fused_matmul_kernel(%arg0: i32, %arg1: memref<512x160xbf16, #tpu.memory_space<vmem>>, %arg2: memref<160x128xbf16, #tpu.memory_space<vmem>>, %arg3: memref<1x128xf32, #tpu.memory_space<vmem>>, %arg4: memref<512x128xbf16, #tpu.memory_space<vmem>>) attributes {dimension_semantics = [#tpu.dimension_semantics<parallel>], iteration_bounds = array<i64: 4>, scalar_prefetch = 0 : i64, scratch_operands = 0 : i64, tpu.core_type = #tpu.core_type<tc>, window_params = [{transform_indices = @transform_0, window_bounds = array<i64: 512, 160>}, {pipeline_mode = #tpu.pipeline_mode<synchronous>, transform_indices = @transform_1, window_bounds = array<i64: 160, 128>}, {pipeline_mode = #tpu.pipeline_mode<synchronous>, transform_indices = @transform_2, window_bounds = array<i64: 1, 128>}, {transform_indices = @transform_3, window_bounds = array<i64: 512, 128>}]} {
    %c0 = arith.constant 0 : index
    %c0_0 = arith.constant 0 : index
    %0 = vector.load %arg1[%c0, %c0_0] : memref<512x160xbf16, #tpu.memory_space<vmem>>, vector<512x160xbf16>
    %c0_1 = arith.constant 0 : index
    %c0_2 = arith.constant 0 : index
    %1 = vector.load %arg2[%c0_1, %c0_2] : memref<160x128xbf16, #tpu.memory_space<vmem>>, vector<160x128xbf16>
    %cst = arith.constant dense<0.000000e+00> : vector<512x128xf32>
    %2 = tpu.matmul %0, %1, %cst {dimension_numbers = #tpu.dot_dimension_numbers<[1], [0], [0], [1], [0, 0, 1, 1], [], []>} : vector<512x160xbf16>, vector<160x128xbf16>, vector<512x128xf32> -> vector<512x128xf32>
    %c0_3 = arith.constant 0 : index
    %c0_4 = arith.constant 0 : index
    %3 = vector.load %arg3[%c0_3, %c0_4] : memref<1x128xf32, #tpu.memory_space<vmem>>, vector<1x128xf32>
    %4 = vector.broadcast %3 : vector<1x128xf32> to vector<512x128xf32>
    %5 = arith.addf %2, %4 : vector<512x128xf32>
    %cst_5 = arith.constant 0.000000e+00 : f32
    %6 = vector.broadcast %cst_5 : f32 to vector<512x128xf32>
    %7 = arith.maximumf %5, %6 : vector<512x128xf32>
    %8 = arith.truncf %7 : vector<512x128xf32> to vector<512x128xbf16>
    %c0_6 = arith.constant 0 : index
    %c0_7 = arith.constant 0 : index
    %9 = vector.load %arg4[%c0_6, %c0_7] : memref<512x128xbf16, #tpu.memory_space<vmem>>, vector<512x128xbf16>
    tpu.vector_store %arg4[%c0_6, %c0_7], %8 {strides = array<i32>} : memref<512x128xbf16, #tpu.memory_space<vmem>>, vector<512x128xbf16>,
    return
  }
  func.func @transform_0(%arg0: i32) -> (i32, i32) {
    %c0_i32 = arith.constant 0 : i32
    %c0_i32_0 = arith.constant 0 : i32
    return %arg0, %c0_i32 : i32, i32
  }
  func.func @transform_1(%arg0: i32) -> (i32, i32) {
    %c0_i32 = arith.constant 0 : i32
    %c0_i32_0 = arith.constant 0 : i32
    %c0_i32_1 = arith.constant 0 : i32
    return %c0_i32, %c0_i32_0 : i32, i32
  }
  func.func @transform_2(%arg0: i32) -> (i32, i32) {
    %c0_i32 = arith.constant 0 : i32
    %c0_i32_0 = arith.constant 0 : i32
    %c0_i32_1 = arith.constant 0 : i32
    return %c0_i32, %c0_i32_0 : i32, i32
  }
  func.func @transform_3(%arg0: i32) -> (i32, i32) {
    %c0_i32 = arith.constant 0 : i32
    %c0_i32_0 = arith.constant 0 : i32
    return %arg0, %c0_i32 : i32, i32
  }
}

</mosaic_0001>

<llo_original>
// kernel: fused_matmul.1
$region0: #{fused_matmul.1}
  #allocation0 [shape = 'u32[]', space=smem, size = 0x4, offset = 0x4, fixed_abs, tag = 'smem constant byte address 0x4 - core index']
  #allocation1 [shape = 'u32[144,128]{1,0:T(1,128)}', space=vmem, size = 0x12000, scoped, tag = 'internal scratch']
  %s0 = inlined_call_operand.vmem [shape: bf16[2048,160], index: 0, kind: input, shape index: {}]
  %s1 = inlined_call_operand.vmem [shape: bf16[160,128], index: 1, kind: input, shape index: {}]
  %s2 = inlined_call_operand.vmem [shape: f32[1,128], index: 2, kind: input, shape index: {}]
  %s3 = inlined_call_operand.vmem [shape: bf16[2048,128], index: 3, kind: output, shape index: {}]
  %s4 = sld [smem:[#allocation0]]
  $region45: #{fused_matmul.1} parent=0
    _
  %s6 = ssub.s32 1, %s4
  %s7 = scalar_select 0, %s6, %s4
  loop: start=0, step=1, limit=6
  $region2: #{fused_matmul.1} parent=0 // loop_pre_header
    _
  $region3: #{fused_matmul.1} parent=0 // loop_header
    %s9 = sphi 0, %s13
    %p10 = scmp.ge.s32.totalorder %s9, 6
    %s19 = sphi 0, %s21
    %s22 = sphi 0, %s19
    %s23 = sphi 0, %s22
    %s39 = sphi 0, %s23
    %s43 = sphi 0, %s43
    %s45 = sphi 0, %s43
    %s46 = sphi 0, %s45
    %s60 = sphi 0, %s46
    %s64 = sphi 0, %s64
    %s66 = sphi 0, %s64
    %s67 = sphi 0, %s66
    %s81 = sphi 0, %s67
    %s87 = sphi 0, %s89
    %s90 = sphi 0, %s87
    %s91 = sphi 0, %s90
    %s107 = sphi 0, %s91
  $region4: #{fused_matmul.1} parent=0 // loop_header_branch
    %12 = sbr.rel (%p10) target = $region8
  $region5: #{fused_matmul.1} parent=0 // loop_body
    %s14 = ssub.s32 %s9, 1
    %s15 = ssub.s32 %s9, 2
    %s16 = sadd.s32 %s9, 1
    %s17 = ssub.s32 %s9, %s16
    %p18 = scmp.eq.s32.totalorder %s17, 0
    %s20 = sadd.s32 %s19, 1
    %s21 = scalar_select %p18, %s19, %s20
    %p24 = pneg %p18
    %p25 = scmp.eq.s32.totalorder %s9, 3
    %p26 = por %p24, %p25
    %p27 = scmp.ne.s32.totalorder %s19, %s22
    %p28 = scmp.eq.s32.totalorder %s9, 0
    %p29 = por %p27, %p28
    %p30 = scmp.ne.s32.totalorder %s19, %s22
    %p31 = scmp.eq.s32.totalorder %s14, 3
    %p32 = por %p30, %p31
    %p33 = scmp.ne.s32.totalorder %s22, %s23
    %p34 = scmp.eq.s32.totalorder %s14, 0
    %p35 = por %p33, %p34
    %p36 = scmp.ne.s32.totalorder %s22, %s23
    %p37 = scmp.eq.s32.totalorder %s15, 3
    %p38 = por %p36, %p37
    %p40 = scmp.ne.s32.totalorder %s23, %s39
    %p41 = scmp.eq.s32.totalorder %s15, 0
    %p42 = por %p40, %p41
    %s44 = sadd.s32 %s43, 1
    %p47 = scmp.eq.s32.totalorder %s9, 3
    %p48 = scmp.ne.s32.totalorder %s43, %s45
    %p49 = scmp.eq.s32.totalorder %s9, 0
    %p50 = por %p48, %p49
    %p51 = scmp.ne.s32.totalorder %s43, %s45
    %p52 = scmp.eq.s32.totalorder %s14, 3
    %p53 = por %p51, %p52
    %p54 = scmp.ne.s32.totalorder %s45, %s46
    %p55 = scmp.eq.s32.totalorder %s14, 0
    %p56 = por %p54, %p55
    %p57 = scmp.ne.s32.totalorder %s45, %s46
    %p58 = scmp.eq.s32.totalorder %s15, 3
    %p59 = por %p57, %p58
    %p61 = scmp.ne.s32.totalorder %s46, %s60
    %p62 = scmp.eq.s32.totalorder %s15, 0
    %p63 = por %p61, %p62
    %s65 = sadd.s32 %s64, 1
    %p68 = scmp.eq.s32.totalorder %s9, 3
    %p69 = scmp.ne.s32.totalorder %s64, %s66
    %p70 = scmp.eq.s32.totalorder %s9, 0
    %p71 = por %p69, %p70
    %p72 = scmp.ne.s32.totalorder %s64, %s66
    %p73 = scmp.eq.s32.totalorder %s14, 3
    %p74 = por %p72, %p73
    %p75 = scmp.ne.s32.totalorder %s66, %s67
    %p76 = scmp.eq.s32.totalorder %s14, 0
    %p77 = por %p75, %p76
    %p78 = scmp.ne.s32.totalorder %s66, %s67
    %p79 = scmp.eq.s32.totalorder %s15, 3
    %p80 = por %p78, %p79
    %p82 = scmp.ne.s32.totalorder %s67, %s81
    %p83 = scmp.eq.s32.totalorder %s15, 0
    %p84 = por %p82, %p83
    %s85 = ssub.s32 %s9, %s16
    %p86 = scmp.eq.s32.totalorder %s85, 0
    %s88 = sadd.s32 %s87, 1
    %s89 = scalar_select %p86, %s87, %s88
    %p92 = pneg %p86
    %p93 = scmp.eq.s32.totalorder %s9, 3
    %p94 = por %p92, %p93
    %p95 = scmp.ne.s32.totalorder %s87, %s90
    %p96 = scmp.eq.s32.totalorder %s9, 0
    %p97 = por %p95, %p96
    %p98 = scmp.ne.s32.totalorder %s87, %s90
    %p99 = scmp.eq.s32.totalorder %s14, 3
    %p100 = por %p98, %p99
    %p101 = scmp.ne.s32.totalorder %s90, %s91
    %p102 = scmp.eq.s32.totalorder %s14, 0
    %p103 = por %p101, %p102
    %p104 = scmp.ne.s32.totalorder %s90, %s91
    %p105 = scmp.eq.s32.totalorder %s15, 3
    %p106 = por %p104, %p105
    %p108 = scmp.ne.s32.totalorder %s91, %s107
    %p109 = scmp.eq.s32.totalorder %s15, 0
    %p110 = por %p108, %p109
    %p111 = scmp.le.s32.totalorder 1, %s9
    %p112 = scmp.lt.s32.totalorder %s9, 5
    %p113 = pnand %p111, %p112
    %p114 = pneg %p113
    // Predicated region
    $region9: #{fused_matmul.1} parent=5 // pred_check
      _
    $region10: #{fused_matmul.1} parent=5 // pred_check_branch
      %116 = sbr.rel (%p113) target = $region12
    $region11: #{fused_matmul.1} parent=5 // pred_region
      %s117 = ssub.s32 %s9, 1
      // Predicated region
      $region13: #{fused_matmul.1} parent=11 // pred_check
        %p118 = pneg %p56
      $region14: #{fused_matmul.1} parent=11 // pred_check_branch
        %120 = sbr.rel (%p118) target = $region16
      $region15: #{fused_matmul.1} parent=11 // pred_region
        _
      $region16: #{fused_matmul.1} parent=11 // pred_fallthru
        _
      // Predicated region
      $region17: #{fused_matmul.1} parent=11 // pred_check
        %p121 = pneg %p77
      $region18: #{fused_matmul.1} parent=11 // pred_check_branch
        %123 = sbr.rel (%p121) target = $region20
      $region19: #{fused_matmul.1} parent=11 // pred_region
        _
      $region20: #{fused_matmul.1} parent=11 // pred_fallthru
        _
    $region12: #{fused_matmul.1} parent=5 // pred_fallthru
      _
    %p124 = scmp.lt.s32.totalorder %s9, 4
    // Predicated region
    $region21: #{fused_matmul.1} parent=5 // pred_check
      %p125 = pneg %p124
    $region22: #{fused_matmul.1} parent=5 // pred_check_branch
      %127 = sbr.rel (%p125) target = $region24
    $region23: #{fused_matmul.1} parent=5 // pred_region
      // Predicated region
      $region25: #{fused_matmul.1} parent=23 // pred_check
        %p128 = pneg %p29
      $region26: #{fused_matmul.1} parent=23 // pred_check_branch
        %130 = sbr.rel (%p128) target = $region28
      $region27: #{fused_matmul.1} parent=23 // pred_region
        %s131 = smul.u32 64, %s9
        %p132 = scmp.lt.s32.totalorder %s131, 255
        %s133 = scalar_select %p132, %s131, 255
        %s134 = smul.addr %s133, 2
        %s135 = smul.addr %s134, 4
        %s136 = scalar_lea.vmem %s0, %s135
        %s137 = smul.u32 64, %s9
      $region28: #{fused_matmul.1} parent=23 // pred_fallthru
        _
    $region24: #{fused_matmul.1} parent=5 // pred_fallthru
      _
    %p138 = scmp.le.s32.totalorder 1, %s9
    %p139 = scmp.lt.s32.totalorder %s9, 5
    %p140 = pnand %p138, %p139
    %p141 = pneg %p140
    // Predicated region
    $region29: #{fused_matmul.1} parent=5 // pred_check
      _
    $region30: #{fused_matmul.1} parent=5 // pred_check_branch
      %143 = sbr.rel (%p140) target = $region32
    $region31: #{fused_matmul.1} parent=5 // pred_region
      %s144 = ssub.s32 %s9, 1
      %s145 = smul.u32 64, %s14
      %p146 = scmp.lt.s32.totalorder %s145, 255
      %s147 = scalar_select %p146, %s145, 255
      %s148 = smul.addr %s147, 2
      %s149 = smul.addr %s148, 4
      %s150 = scalar_lea.vmem %s0, %s149
      %p151 = pneg %p35
      %p152 = pneg %p32
      %p153 = pneg %p56
      %p154 = pneg %p53
      %p155 = pneg %p77
      %p156 = pneg %p74
      %p157 = pneg %p103
      %p158 = pneg %p100
      %s159 = smul.u32 64, %s14
      %p160 = scmp.lt.s32.totalorder %s159, 255
      %s161 = scalar_select %p160, %s159, 255
      %s162 = smul.addr %s161, 4
      %s163 = scalar_lea.vmem %s3, %s162
      %s164 = smul.u32 64, %s14
      %p165 = scmp.lt.s32.totalorder %s164, 255
      %s166 = scalar_select %p165, %s164, 255
      %s167 = smul.addr %s166, 2
      %s168 = smul.addr %s167, 4
      %s169 = scalar_lea.vmem %s0, %s168
      %s170 = smul.u32 64, %s14
      %s171 = smul.u32 64, %s14
      %p172 = scmp.lt.s32.totalorder %s171, 255
      %s173 = scalar_select %p172, %s171, 255
      %s174 = smul.addr %s173, 4
      %s175 = scalar_lea.vmem %s3, %s174
      %s176 = smul.u32 64, %s14
      %v178 = vld [vmem:[%s169] sm:$0xff]
      %v179 = vld [vmem:[%s169 + $0x8] sm:$0xff]
      %v180 = vld [vmem:[%s169 + $0x10] sm:$0xff]
      %v181 = vld [vmem:[%s169 + $0x18] sm:$0xff]
      %v182 = vld [vmem:[%s169 + $0x20] sm:$0xff]
      %v183 = vld [vmem:[%s169 + $0x28] sm:$0xff]
      %v184 = vld [vmem:[%s169 + $0x30] sm:$0xff]
      %v185 = vld [vmem:[%s169 + $0x38] sm:$0xff]
      %v186 = vld [vmem:[%s169 + $0x40] sm:$0xff]
      %v187 = vld [vmem:[%s169 + $0x48] sm:$0xff]
      %v188 = vld [vmem:[%s169 + $0x50] sm:$0xff]
      %v189 = vld [vmem:[%s169 + $0x58] sm:$0xff]
      %v190 = vld [vmem:[%s169 + $0x60] sm:$0xff]
      %v191 = vld [vmem:[%s169 + $0x68] sm:$0xff]
      %v192 = vld [vmem:[%s169 + $0x70] sm:$0xff]
      %v193 = vld [vmem:[%s169 + $0x78] sm:$0xff]
      %v194 = vld [vmem:[%s169 + $0x80] sm:$0xff]
      %v195 = vld [vmem:[%s169 + $0x88] sm:$0xff]
      %v196 = vld [vmem:[%s169 + $0x90] sm:$0xff]
      %v197 = vld [vmem:[%s169 + $0x98] sm:$0xff]
      %v198 = vld [vmem:[%s169 + $0xa0] sm:$0xff]
      %v199 = vld [vmem:[%s169 + $0xa8] sm:$0xff]
      %v200 = vld [vmem:[%s169 + $0xb0] sm:$0xff]
      %v201 = vld [vmem:[%s169 + $0xb8] sm:$0xff]
      %v202 = vld [vmem:[%s169 + $0xc0] sm:$0xff]
      %v203 = vld [vmem:[%s169 + $0xc8] sm:$0xff]
      %v204 = vld [vmem:[%s169 + $0xd0] sm:$0xff]
      %v205 = vld [vmem:[%s169 + $0xd8] sm:$0xff]
      %v206 = vld [vmem:[%s169 + $0xe0] sm:$0xff]
      %v207 = vld [vmem:[%s169 + $0xe8] sm:$0xff]
      %v208 = vld [vmem:[%s169 + $0xf0] sm:$0xff]
      %v209 = vld [vmem:[%s169 + $0xf8] sm:$0xff]
      %v210 = vld [vmem:[%s169 + $0x100] sm:$0xff]
      %v211 = vld [vmem:[%s169 + $0x108] sm:$0xff]
      %v212 = vld [vmem:[%s169 + $0x110] sm:$0xff]
      %v213 = vld [vmem:[%s169 + $0x118] sm:$0xff]
      %v214 = vld [vmem:[%s169 + $0x120] sm:$0xff]
      %v215 = vld [vmem:[%s169 + $0x128] sm:$0xff]
      %v216 = vld [vmem:[%s169 + $0x130] sm:$0xff]
      %v217 = vld [vmem:[%s169 + $0x138] sm:$0xff]
      %v218 = vld [vmem:[%s169 + $0x140] sm:$0xff]
      %v219 = vld [vmem:[%s169 + $0x148] sm:$0xff]
      %v220 = vld [vmem:[%s169 + $0x150] sm:$0xff]
      %v221 = vld [vmem:[%s169 + $0x158] sm:$0xff]
      %v222 = vld [vmem:[%s169 + $0x160] sm:$0xff]
      %v223 = vld [vmem:[%s169 + $0x168] sm:$0xff]
      %v224 = vld [vmem:[%s169 + $0x170] sm:$0xff]
      %v225 = vld [vmem:[%s169 + $0x178] sm:$0xff]
      %v226 = vld [vmem:[%s169 + $0x180] sm:$0xff]
      %v227 = vld [vmem:[%s169 + $0x188] sm:$0xff]
      %v228 = vld [vmem:[%s169 + $0x190] sm:$0xff]
      %v229 = vld [vmem:[%s169 + $0x198] sm:$0xff]
      %v230 = vld [vmem:[%s169 + $0x1a0] sm:$0xff]
      %v231 = vld [vmem:[%s169 + $0x1a8] sm:$0xff]
      %v232 = vld [vmem:[%s169 + $0x1b0] sm:$0xff]
      %v233 = vld [vmem:[%s169 + $0x1b8] sm:$0xff]
      %v234 = vld [vmem:[%s169 + $0x1c0] sm:$0xff]
      %v235 = vld [vmem:[%s169 + $0x1c8] sm:$0xff]
      %v236 = vld [vmem:[%s169 + $0x1d0] sm:$0xff]
      %v237 = vld [vmem:[%s169 + $0x1d8] sm:$0xff]
      %v238 = vld [vmem:[%s169 + $0x1e0] sm:$0xff]
      %v239 = vld [vmem:[%s169 + $0x1e8] sm:$0xff]
      %v240 = vld [vmem:[%s169 + $0x1f0] sm:$0xff]
      %v241 = vld [vmem:[%s169 + $0x1f8] sm:$0xff]
      %v242 = vld [vmem:[%s1] sm:$0xf]
      %v243 = vld [vmem:[%s1 + $0x4] sm:$0xf]
      %v244 = vld [vmem:[%s1 + $0x8] sm:$0xf]
      %v245 = vld [vmem:[%s1 + $0xc] sm:$0xf]
      %v246 = vld [vmem:[%s1 + $0x10] sm:$0xf]
      %v247 = vld [vmem:[%s1 + $0x14] sm:$0xf]
      %v248 = vld [vmem:[%s1 + $0x18] sm:$0xf]
      %v249 = vld [vmem:[%s1 + $0x1c] sm:$0xf]
      %v250 = vld [vmem:[%s1 + $0x20] sm:$0xf]
      %v251 = vld [vmem:[%s1 + $0x24] sm:$0xf]
      %v252 = vld [vmem:[%s1 + $0x28] sm:$0xf]
      %v253 = vld [vmem:[%s1 + $0x2c] sm:$0xf]
      %v254 = vld [vmem:[%s1 + $0x30] sm:$0xf]
      %v255 = vld [vmem:[%s1 + $0x34] sm:$0xf]
      %v256 = vld [vmem:[%s1 + $0x38] sm:$0xf]
      %v257 = vld [vmem:[%s1 + $0x3c] sm:$0xf]
      %v258 = vld [vmem:[%s1 + $0x40] sm:$0xf]
      %v259 = vld [vmem:[%s1 + $0x44] sm:$0xf]
      %v260 = vld [vmem:[%s1 + $0x48] sm:$0xf]
      %v261 = vld [vmem:[%s1 + $0x4c] sm:$0xf]
      %v262 = vld [vmem:[%s2] sm:$0x1]
      %v264 = vlaneseq
      %v265 = vshrl.u32 %v264, 7
      %v266 = vsub.s32 0, %v265
      %v267 = vrot.slane %v262, %v266
      %v333 = vunpack.c.l.b16 %v178
      %v334 = vunpack.c.h.b16 %v178
      %v335 = vunpack.c.l.b16 %v179
      %v336 = vunpack.c.h.b16 %v179
      %v337 = vunpack.c.l.b16 %v180
      %v338 = vunpack.c.h.b16 %v180
      %v339 = vunpack.c.l.b16 %v181
      %v340 = vunpack.c.h.b16 %v181
      %v341 = vunpack.c.l.b16 %v182
      %v342 = vunpack.c.h.b16 %v182
      %v343 = vunpack.c.l.b16 %v183
      %v344 = vunpack.c.h.b16 %v183
      %v345 = vunpack.c.l.b16 %v184
      %v346 = vunpack.c.h.b16 %v184
      %v347 = vunpack.c.l.b16 %v185
      %v348 = vunpack.c.h.b16 %v185
      %v349 = vunpack.c.l.b16 %v186
      %v350 = vunpack.c.h.b16 %v186
      %v351 = vunpack.c.l.b16 %v187
      %v352 = vunpack.c.h.b16 %v187
      %v353 = vunpack.c.l.b16 %v188
      %v354 = vunpack.c.h.b16 %v188
      %v355 = vunpack.c.l.b16 %v189
      %v356 = vunpack.c.h.b16 %v189
      %v357 = vunpack.c.l.b16 %v190
      %v358 = vunpack.c.h.b16 %v190
      %v359 = vunpack.c.l.b16 %v191
      %v360 = vunpack.c.h.b16 %v191
      %v361 = vunpack.c.l.b16 %v192
      %v362 = vunpack.c.h.b16 %v192
      %v363 = vunpack.c.l.b16 %v193
      %v364 = vunpack.c.h.b16 %v193
      %v365 = vunpack.c.l.b16 %v194
      %v366 = vunpack.c.h.b16 %v194
      %v367 = vunpack.c.l.b16 %v195
      %v368 = vunpack.c.h.b16 %v195
      %v369 = vunpack.c.l.b16 %v196
      %v370 = vunpack.c.h.b16 %v196
      %v371 = vunpack.c.l.b16 %v197
      %v372 = vunpack.c.h.b16 %v197
      %v373 = vunpack.c.l.b16 %v198
      %v374 = vunpack.c.h.b16 %v198
      %v375 = vunpack.c.l.b16 %v199
      %v376 = vunpack.c.h.b16 %v199
      %v377 = vunpack.c.l.b16 %v200
      %v378 = vunpack.c.h.b16 %v200
      %v379 = vunpack.c.l.b16 %v201
      %v380 = vunpack.c.h.b16 %v201
      %v381 = vunpack.c.l.b16 %v202
      %v382 = vunpack.c.h.b16 %v202
      %v383 = vunpack.c.l.b16 %v203
      %v384 = vunpack.c.h.b16 %v203
      %v385 = vunpack.c.l.b16 %v204
      %v386 = vunpack.c.h.b16 %v204
      %v387 = vunpack.c.l.b16 %v205
      %v388 = vunpack.c.h.b16 %v205
      %v389 = vunpack.c.l.b16 %v206
      %v390 = vunpack.c.h.b16 %v206
      %v391 = vunpack.c.l.b16 %v207
      %v392 = vunpack.c.h.b16 %v207
      %v393 = vunpack.c.l.b16 %v208
      %v394 = vunpack.c.h.b16 %v208
      %v395 = vunpack.c.l.b16 %v209
      %v396 = vunpack.c.h.b16 %v209
      %v397 = vunpack.c.l.b16 %v210
      %v398 = vunpack.c.h.b16 %v210
      %v399 = vunpack.c.l.b16 %v211
      %v400 = vunpack.c.h.b16 %v211
      %v401 = vunpack.c.l.b16 %v212
      %v402 = vunpack.c.h.b16 %v212
      %v403 = vunpack.c.l.b16 %v213
      %v404 = vunpack.c.h.b16 %v213
      %v405 = vunpack.c.l.b16 %v214
      %v406 = vunpack.c.h.b16 %v214
      %v407 = vunpack.c.l.b16 %v215
      %v408 = vunpack.c.h.b16 %v215
      %v409 = vunpack.c.l.b16 %v216
      %v410 = vunpack.c.h.b16 %v216
      %v411 = vunpack.c.l.b16 %v217
      %v412 = vunpack.c.h.b16 %v217
      %v413 = vunpack.c.l.b16 %v218
      %v414 = vunpack.c.h.b16 %v218
      %v415 = vunpack.c.l.b16 %v219
      %v416 = vunpack.c.h.b16 %v219
      %v417 = vunpack.c.l.b16 %v220
      %v418 = vunpack.c.h.b16 %v220
      %v419 = vunpack.c.l.b16 %v221
      %v420 = vunpack.c.h.b16 %v221
      %v421 = vunpack.c.l.b16 %v222
      %v422 = vunpack.c.h.b16 %v222
      %v423 = vunpack.c.l.b16 %v223
      %v424 = vunpack.c.h.b16 %v223
      %v425 = vunpack.c.l.b16 %v224
      %v426 = vunpack.c.h.b16 %v224
      %v427 = vunpack.c.l.b16 %v225
      %v428 = vunpack.c.h.b16 %v225
      %v429 = vunpack.c.l.b16 %v226
      %v430 = vunpack.c.h.b16 %v226
      %v431 = vunpack.c.l.b16 %v227
      %v432 = vunpack.c.h.b16 %v227
      %v433 = vunpack.c.l.b16 %v228
      %v434 = vunpack.c.h.b16 %v228
      %v435 = vunpack.c.l.b16 %v229
      %v436 = vunpack.c.h.b16 %v229
      %v437 = vunpack.c.l.b16 %v230
      %v438 = vunpack.c.h.b16 %v230
      %v439 = vunpack.c.l.b16 %v231
      %v440 = vunpack.c.h.b16 %v231
      %v441 = vunpack.c.l.b16 %v232
      %v442 = vunpack.c.h.b16 %v232
      %v443 = vunpack.c.l.b16 %v233
      %v444 = vunpack.c.h.b16 %v233
      %v445 = vunpack.c.l.b16 %v234
      %v446 = vunpack.c.h.b16 %v234
      %v447 = vunpack.c.l.b16 %v235
      %v448 = vunpack.c.h.b16 %v235
      %v449 = vunpack.c.l.b16 %v236
      %v450 = vunpack.c.h.b16 %v236
      %v451 = vunpack.c.l.b16 %v237
      %v452 = vunpack.c.h.b16 %v237
      %v453 = vunpack.c.l.b16 %v238
      %v454 = vunpack.c.h.b16 %v238
      %v455 = vunpack.c.l.b16 %v239
      %v456 = vunpack.c.h.b16 %v239
      %v457 = vunpack.c.l.b16 %v240
      %v458 = vunpack.c.h.b16 %v240
      %v459 = vunpack.c.l.b16 %v241
      %v460 = vunpack.c.h.b16 %v241
      %v461 = vpack.c.b16 %v335, %v333
      %v462 = vpack.c.b16 %v336, %v334
      %v463 = vpack.c.b16 %v339, %v337
      %v464 = vpack.c.b16 %v340, %v338
      %v465 = vpack.c.b16 %v343, %v341
      %v466 = vpack.c.b16 %v344, %v342
      %v467 = vpack.c.b16 %v347, %v345
      %v468 = vpack.c.b16 %v348, %v346
      %v469 = vpack.c.b16 %v351, %v349
      %v470 = vpack.c.b16 %v352, %v350
      %v471 = vpack.c.b16 %v355, %v353
      %v472 = vpack.c.b16 %v356, %v354
      %v473 = vpack.c.b16 %v359, %v357
      %v474 = vpack.c.b16 %v360, %v358
      %v475 = vpack.c.b16 %v363, %v361
      %v476 = vpack.c.b16 %v364, %v362
      %v477 = vpack.c.b16 %v367, %v365
      %v478 = vpack.c.b16 %v368, %v366
      %v479 = vpack.c.b16 %v371, %v369
      %v480 = vpack.c.b16 %v372, %v370
      %v481 = vpack.c.b16 %v375, %v373
      %v482 = vpack.c.b16 %v376, %v374
      %v483 = vpack.c.b16 %v379, %v377
      %v484 = vpack.c.b16 %v380, %v378
      %v485 = vpack.c.b16 %v383, %v381
      %v486 = vpack.c.b16 %v384, %v382
      %v487 = vpack.c.b16 %v387, %v385
      %v488 = vpack.c.b16 %v388, %v386
      %v489 = vpack.c.b16 %v391, %v389
      %v490 = vpack.c.b16 %v392, %v390
      %v491 = vpack.c.b16 %v395, %v393
      %v492 = vpack.c.b16 %v396, %v394
      %v493 = vpack.c.b16 %v399, %v397
      %v494 = vpack.c.b16 %v400, %v398
      %v495 = vpack.c.b16 %v403, %v401
      %v496 = vpack.c.b16 %v404, %v402
      %v497 = vpack.c.b16 %v407, %v405
      %v498 = vpack.c.b16 %v408, %v406
      %v499 = vpack.c.b16 %v411, %v409
      %v500 = vpack.c.b16 %v412, %v410
      %v501 = vpack.c.b16 %v415, %v413
      %v502 = vpack.c.b16 %v416, %v414
      %v503 = vpack.c.b16 %v419, %v417
      %v504 = vpack.c.b16 %v420, %v418
      %v505 = vpack.c.b16 %v423, %v421
      %v506 = vpack.c.b16 %v424, %v422
      %v507 = vpack.c.b16 %v427, %v425
      %v508 = vpack.c.b16 %v428, %v426
      %v509 = vpack.c.b16 %v431, %v429
      %v510 = vpack.c.b16 %v432, %v430
      %v511 = vpack.c.b16 %v435, %v433
      %v512 = vpack.c.b16 %v436, %v434
      %v513 = vpack.c.b16 %v439, %v437
      %v514 = vpack.c.b16 %v440, %v438
      %v515 = vpack.c.b16 %v443, %v441
      %v516 = vpack.c.b16 %v444, %v442
      %v517 = vpack.c.b16 %v447, %v445
      %v518 = vpack.c.b16 %v448, %v446
      %v519 = vpack.c.b16 %v451, %v449
      %v520 = vpack.c.b16 %v452, %v450
      %v521 = vpack.c.b16 %v455, %v453
      %v522 = vpack.c.b16 %v456, %v454
      %v523 = vpack.c.b16 %v459, %v457
      %v524 = vpack.c.b16 %v460, %v458
      %v577 = vunpack.c.l.b16 %v242
      %v578 = vunpack.c.l.b16 %v243
      %v579 = vunpack.c.l.b16 %v244
      %v580 = vunpack.c.l.b16 %v245
      %v581 = vunpack.c.l.b16 %v246
      %v582 = vunpack.c.l.b16 %v247
      %v583 = vunpack.c.l.b16 %v248
      %v584 = vunpack.c.l.b16 %v249
      %v585 = vunpack.c.l.b16 %v250
      %v586 = vunpack.c.l.b16 %v251
      %v587 = vunpack.c.l.b16 %v252
      %v588 = vunpack.c.l.b16 %v253
      %v589 = vunpack.c.l.b16 %v254
      %v590 = vunpack.c.l.b16 %v255
      %v591 = vunpack.c.l.b16 %v256
      %v592 = vunpack.c.l.b16 %v257
      %v593 = vunpack.c.l.b16 %v258
      %v594 = vunpack.c.l.b16 %v259
      %v595 = vunpack.c.l.b16 %v260
      %v596 = vunpack.c.l.b16 %v261
      %v597 = vpack.c.b16 %v578, %v577
      %v598 = vpack.c.b16 %v580, %v579
      %v599 = vpack.c.b16 %v582, %v581
      %v600 = vpack.c.b16 %v584, %v583
      %v601 = vpack.c.b16 %v586, %v585
      %v602 = vpack.c.b16 %v588, %v587
      %v603 = vpack.c.b16 %v590, %v589
      %v604 = vpack.c.b16 %v592, %v591
      %v605 = vpack.c.b16 %v594, %v593
      %v606 = vpack.c.b16 %v596, %v595
      %vm617 = vcmask 261120
      %v619 = vsel %vm617, %v462, 0
      %v622 = vsel %vm617, %v464, 0
      %v625 = vsel %vm617, %v466, 0
      %v628 = vsel %vm617, %v468, 0
      %v631 = vsel %vm617, %v470, 0
      %v634 = vsel %vm617, %v472, 0
      %v637 = vsel %vm617, %v474, 0
      %v640 = vsel %vm617, %v476, 0
      %v643 = vsel %vm617, %v478, 0
      %v646 = vsel %vm617, %v480, 0
      %v649 = vsel %vm617, %v482, 0
      %v652 = vsel %vm617, %v484, 0
      %v655 = vsel %vm617, %v486, 0
      %v658 = vsel %vm617, %v488, 0
      %v661 = vsel %vm617, %v490, 0
      %v664 = vsel %vm617, %v492, 0
      %v667 = vsel %vm617, %v494, 0
      %v670 = vsel %vm617, %v496, 0
      %v673 = vsel %vm617, %v498, 0
      %v676 = vsel %vm617, %v500, 0
      %v679 = vsel %vm617, %v502, 0
      %v682 = vsel %vm617, %v504, 0
      %v685 = vsel %vm617, %v506, 0
      %v688 = vsel %vm617, %v508, 0
      %v691 = vsel %vm617, %v510, 0
      %v694 = vsel %vm617, %v512, 0
      %v697 = vsel %vm617, %v514, 0
      %v700 = vsel %vm617, %v516, 0
      %v703 = vsel %vm617, %v518, 0
      %v706 = vsel %vm617, %v520, 0
      %v709 = vsel %vm617, %v522, 0
      %v712 = vsel %vm617, %v524, 0
      %714 = vmatprep.subr.bf16.mxu0 0
      %715 = vmatpush1.bf16.msra.mxu0 %v597
      %716 = vmatprep.subr.bf16.mxu0 0
      %717 = vmatpush1.bf16.msra.mxu0 %v598
      %718 = vmatprep.subr.bf16.mxu0 0
      %719 = vmatpush1.bf16.msra.mxu0 %v599
      %720 = vmatprep.subr.bf16.mxu0 0
      %721 = vmatpush1.bf16.msra.mxu0 %v600
      %722 = vmatprep.subr.bf16.mxu0 0
      %723 = vmatpush1.bf16.msra.mxu0 %v601
      %724 = vmatprep.subr.bf16.mxu0 0
      %725 = vmatpush1.bf16.msra.mxu0 %v602
      %726 = vmatprep.subr.bf16.mxu0 0
      %727 = vmatpush1.bf16.msra.mxu0 %v603
      %728 = vmatprep.subr.bf16.mxu0 0
      %729 = vmatpush1.bf16.msra.mxu0 %v604
      %730 = vmatprep.subr.bf16.mxu0 0
      %731 = vmatpush1.bf16.msra.mxu0 %v605
      %732 = vmatprep.subr.bf16.mxu0 0
      %733 = vmatpush1.bf16.msra.mxu0 %v606
      %734 = vmatprep.subr.bf16.mxu0 0
      %735 = vmatpush1.bf16.msra.mxu0 0
      %736 = vmatprep.subr.bf16.mxu0 0
      %737 = vmatpush1.bf16.msra.mxu0 0
      %738 = vmatprep.subr.bf16.mxu0 0
      %739 = vmatpush1.bf16.msra.mxu0 0
      %740 = vmatprep.subr.bf16.mxu0 0
      %741 = vmatpush1.bf16.msra.mxu0 0
      %742 = vmatprep.subr.bf16.mxu0 0
      %743 = vmatpush1.bf16.msra.mxu0 0
      %744 = vmatprep.subr.bf16.mxu0 0
      %745 = vmatpush1.bf16.msra.mxu0 0
      %746 = vmatprep.mubr.bf16.mxu0 %v619
      %747 = vmatmul.mubr.bf16.gmra.mrb[0].mxu0 %v461
      %v748 = vpop.f32.mrb[0].mxu0
      %v749 = vadd.f32 %v267, %v748
      %v750 = vpop.f32.mrb[0].mxu0
      %v751 = vpop.f32.mrb[0].mxu0
      %v752 = vadd.f32 %v267, %v751
      %v753 = vpop.f32.mrb[0].mxu0
      %754 = vmatprep.mubr.bf16.mxu0 %v622
      %755 = vmatmul.mubr.bf16.gmra.mrb[0].mxu0 %v463
      %v756 = vpop.f32.mrb[0].mxu0
      %v757 = vadd.f32 %v267, %v756
      %v758 = vpop.f32.mrb[0].mxu0
      %v759 = vpop.f32.mrb[0].mxu0
      %v760 = vadd.f32 %v267, %v759
      %v761 = vpop.f32.mrb[0].mxu0
      %762 = vmatprep.mubr.bf16.mxu0 %v625
      %763 = vmatmul.mubr.bf16.gmra.mrb[0].mxu0 %v465
      %v764 = vpop.f32.mrb[0].mxu0
      %v765 = vadd.f32 %v267, %v764
      %v766 = vpop.f32.mrb[0].mxu0
      %v767 = vpop.f32.mrb[0].mxu0
      %v768 = vadd.f32 %v267, %v767
      %v769 = vpop.f32.mrb[0].mxu0
      %770 = vmatprep.mubr.bf16.mxu0 %v628
      %771 = vmatmul.mubr.bf16.gmra.mrb[0].mxu0 %v467
      %v772 = vpop.f32.mrb[0].mxu0
      %v773 = vadd.f32 %v267, %v772
      %v774 = vpop.f32.mrb[0].mxu0
      %v775 = vpop.f32.mrb[0].mxu0
      %v776 = vadd.f32 %v267, %v775
      %v777 = vpop.f32.mrb[0].mxu0
      %778 = vmatprep.mubr.bf16.mxu0 %v631
      %779 = vmatmul.mubr.bf16.gmra.mrb[0].mxu0 %v469
      %v780 = vpop.f32.mrb[0].mxu0
      %v781 = vadd.f32 %v267, %v780
      %v782 = vpop.f32.mrb[0].mxu0
      %v783 = vpop.f32.mrb[0].mxu0
      %v784 = vadd.f32 %v267, %v783
      %v785 = vpop.f32.mrb[0].mxu0
      %786 = vmatprep.mubr.bf16.mxu0 %v634
      %787 = vmatmul.mubr.bf16.gmra.mrb[0].mxu0 %v471
      %v788 = vpop.f32.mrb[0].mxu0
      %v789 = vadd.f32 %v267, %v788
      %v790 = vpop.f32.mrb[0].mxu0
      %v791 = vpop.f32.mrb[0].mxu0
      %v792 = vadd.f32 %v267, %v791
      %v793 = vpop.f32.mrb[0].mxu0
      %794 = vmatprep.mubr.bf16.mxu0 %v637
      %795 = vmatmul.mubr.bf16.gmra.mrb[0].mxu0 %v473
      %v796 = vpop.f32.mrb[0].mxu0
      %v797 = vadd.f32 %v267, %v796
      %v798 = vpop.f32.mrb[0].mxu0
      %v799 = vpop.f32.mrb[0].mxu0
      %v800 = vadd.f32 %v267, %v799
      %v801 = vpop.f32.mrb[0].mxu0
      %802 = vmatprep.mubr.bf16.mxu0 %v640
      %803 = vmatmul.mubr.bf16.gmra.mrb[0].mxu0 %v475
      %v804 = vpop.f32.mrb[0].mxu0
      %v805 = vadd.f32 %v267, %v804
      %v806 = vpop.f32.mrb[0].mxu0
      %v807 = vpop.f32.mrb[0].mxu0
      %v808 = vadd.f32 %v267, %v807
      %v809 = vpop.f32.mrb[0].mxu0
      %810 = vmatprep.mubr.bf16.mxu0 %v643
      %811 = vmatmul.mubr.bf16.gmra.mrb[0].mxu0 %v477
      %v812 = vpop.f32.mrb[0].mxu0
      %v813 = vadd.f32 %v267, %v812
      %v814 = vpop.f32.mrb[0].mxu0
      %v815 = vpop.f32.mrb[0].mxu0
      %v816 = vadd.f32 %v267, %v815
      %v817 = vpop.f32.mrb[0].mxu0
      %818 = vmatprep.mubr.bf16.mxu0 %v646
      %819 = vmatmul.mubr.bf16.gmra.mrb[0].mxu0 %v479
      %v820 = vpop.f32.mrb[0].mxu0
      %v821 = vadd.f32 %v267, %v820
      %v822 = vpop.f32.mrb[0].mxu0
      %v823 = vpop.f32.mrb[0].mxu0
      %v824 = vadd.f32 %v267, %v823
      %v825 = vpop.f32.mrb[0].mxu0
      %826 = vmatprep.mubr.bf16.mxu0 %v649
      %827 = vmatmul.mubr.bf16.gmra.mrb[0].mxu0 %v481
      %v828 = vpop.f32.mrb[0].mxu0
      %v829 = vadd.f32 %v267, %v828
      %v830 = vpop.f32.mrb[0].mxu0
      %v831 = vpop.f32.mrb[0].mxu0
      %v832 = vadd.f32 %v267, %v831
      %v833 = vpop.f32.mrb[0].mxu0
      %834 = vmatprep.mubr.bf16.mxu0 %v652
      %835 = vmatmul.mubr.bf16.gmra.mrb[0].mxu0 %v483
      %v836 = vpop.f32.mrb[0].mxu0
      %v837 = vadd.f32 %v267, %v836
      %v838 = vpop.f32.mrb[0].mxu0
      %v839 = vpop.f32.mrb[0].mxu0
      %v840 = vadd.f32 %v267, %v839
      %v841 = vpop.f32.mrb[0].mxu0
      %842 = vmatprep.mubr.bf16.mxu0 %v655
      %843 = vmatmul.mubr.bf16.gmra.mrb[0].mxu0 %v485
      %v844 = vpop.f32.mrb[0].mxu0
      %v845 = vadd.f32 %v267, %v844
      %v846 = vpop.f32.mrb[0].mxu0
      %v847 = vpop.f32.mrb[0].mxu0
      %v848 = vadd.f32 %v267, %v847
      %v849 = vpop.f32.mrb[0].mxu0
      %850 = vmatprep.mubr.bf16.mxu0 %v658
      %851 = vmatmul.mubr.bf16.gmra.mrb[0].mxu0 %v487
      %v852 = vpop.f32.mrb[0].mxu0
      %v853 = vadd.f32 %v267, %v852
      %v854 = vpop.f32.mrb[0].mxu0
      %v855 = vpop.f32.mrb[0].mxu0
      %v856 = vadd.f32 %v267, %v855
      %v857 = vpop.f32.mrb[0].mxu0
      %858 = vmatprep.mubr.bf16.mxu0 %v661
      %859 = vmatmul.mubr.bf16.gmra.mrb[0].mxu0 %v489
      %v860 = vpop.f32.mrb[0].mxu0
      %v861 = vadd.f32 %v267, %v860
      %v862 = vpop.f32.mrb[0].mxu0
      %v863 = vpop.f32.mrb[0].mxu0
      %v864 = vadd.f32 %v267, %v863
      %v865 = vpop.f32.mrb[0].mxu0
      %866 = vmatprep.mubr.bf16.mxu0 %v664
      %867 = vmatmul.mubr.bf16.gmra.mrb[0].mxu0 %v491
      %v868 = vpop.f32.mrb[0].mxu0
      %v869 = vadd.f32 %v267, %v868
      %v870 = vpop.f32.mrb[0].mxu0
      %v871 = vpop.f32.mrb[0].mxu0
      %v872 = vadd.f32 %v267, %v871
      %v873 = vpop.f32.mrb[0].mxu0
      %874 = vmatprep.mubr.bf16.mxu0 %v667
      %875 = vmatmul.mubr.bf16.gmra.mrb[0].mxu0 %v493
      %v876 = vpop.f32.mrb[0].mxu0
      %v877 = vadd.f32 %v267, %v876
      %v878 = vpop.f32.mrb[0].mxu0
      %v879 = vpop.f32.mrb[0].mxu0
      %v880 = vadd.f32 %v267, %v879
      %v881 = vpop.f32.mrb[0].mxu0
      %882 = vmatprep.mubr.bf16.mxu0 %v670
      %883 = vmatmul.mubr.bf16.gmra.mrb[0].mxu0 %v495
      %v884 = vpop.f32.mrb[0].mxu0
      %v885 = vadd.f32 %v267, %v884
      %v886 = vpop.f32.mrb[0].mxu0
      %v887 = vpop.f32.mrb[0].mxu0
      %v888 = vadd.f32 %v267, %v887
      %v889 = vpop.f32.mrb[0].mxu0
      %890 = vmatprep.mubr.bf16.mxu0 %v673
      %891 = vmatmul.mubr.bf16.gmra.mrb[0].mxu0 %v497
      %v892 = vpop.f32.mrb[0].mxu0
      %v893 = vadd.f32 %v267, %v892
      %v894 = vpop.f32.mrb[0].mxu0
      %v895 = vpop.f32.mrb[0].mxu0
      %v896 = vadd.f32 %v267, %v895
      %v897 = vpop.f32.mrb[0].mxu0
      %898 = vmatprep.mubr.bf16.mxu0 %v676
      %899 = vmatmul.mubr.bf16.gmra.mrb[0].mxu0 %v499
      %v900 = vpop.f32.mrb[0].mxu0
      %v901 = vadd.f32 %v267, %v900
      %v902 = vpop.f32.mrb[0].mxu0
      %v903 = vpop.f32.mrb[0].mxu0
      %v904 = vadd.f32 %v267, %v903
      %v905 = vpop.f32.mrb[0].mxu0
      %906 = vmatprep.mubr.bf16.mxu0 %v679
      %907 = vmatmul.mubr.bf16.gmra.mrb[0].mxu0 %v501
      %v908 = vpop.f32.mrb[0].mxu0
      %v909 = vadd.f32 %v267, %v908
      %v910 = vpop.f32.mrb[0].mxu0
      %v911 = vpop.f32.mrb[0].mxu0
      %v912 = vadd.f32 %v267, %v911
      %v913 = vpop.f32.mrb[0].mxu0
      %914 = vmatprep.mubr.bf16.mxu0 %v682
      %915 = vmatmul.mubr.bf16.gmra.mrb[0].mxu0 %v503
      %v916 = vpop.f32.mrb[0].mxu0
      %v917 = vadd.f32 %v267, %v916
      %v918 = vpop.f32.mrb[0].mxu0
      %v919 = vpop.f32.mrb[0].mxu0
      %v920 = vadd.f32 %v267, %v919
      %v921 = vpop.f32.mrb[0].mxu0
      %922 = vmatprep.mubr.bf16.mxu0 %v685
      %923 = vmatmul.mubr.bf16.gmra.mrb[0].mxu0 %v505
      %v924 = vpop.f32.mrb[0].mxu0
      %v925 = vadd.f32 %v267, %v924
      %v926 = vpop.f32.mrb[0].mxu0
      %v927 = vpop.f32.mrb[0].mxu0
      %v928 = vadd.f32 %v267, %v927
      %v929 = vpop.f32.mrb[0].mxu0
      %930 = vmatprep.mubr.bf16.mxu0 %v688
      %931 = vmatmul.mubr.bf16.gmra.mrb[0].mxu0 %v507
      %v932 = vpop.f32.mrb[0].mxu0
      %v933 = vadd.f32 %v267, %v932
      %v934 = vpop.f32.mrb[0].mxu0
      %v935 = vpop.f32.mrb[0].mxu0
      %v936 = vadd.f32 %v267, %v935
      %v937 = vpop.f32.mrb[0].mxu0
      %938 = vmatprep.mubr.bf16.mxu0 %v691
      %939 = vmatmul.mubr.bf16.gmra.mrb[0].mxu0 %v509
      %v940 = vpop.f32.mrb[0].mxu0
      %v941 = vadd.f32 %v267, %v940
      %v942 = vpop.f32.mrb[0].mxu0
      %v943 = vpop.f32.mrb[0].mxu0
      %v944 = vadd.f32 %v267, %v943
      %v945 = vpop.f32.mrb[0].mxu0
      %946 = vmatprep.mubr.bf16.mxu0 %v694
      %947 = vmatmul.mubr.bf16.gmra.mrb[0].mxu0 %v511
      %v948 = vpop.f32.mrb[0].mxu0
      %v949 = vadd.f32 %v267, %v948
      %v950 = vpop.f32.mrb[0].mxu0
      %v951 = vpop.f32.mrb[0].mxu0
      %v952 = vadd.f32 %v267, %v951
      %v953 = vpop.f32.mrb[0].mxu0
      %954 = vmatprep.mubr.bf16.mxu0 %v697
      %955 = vmatmul.mubr.bf16.gmra.mrb[0].mxu0 %v513
      %v956 = vpop.f32.mrb[0].mxu0
      %v957 = vadd.f32 %v267, %v956
      %v958 = vpop.f32.mrb[0].mxu0
      %v959 = vpop.f32.mrb[0].mxu0
      %v960 = vadd.f32 %v267, %v959
      %v961 = vpop.f32.mrb[0].mxu0
      %962 = vmatprep.mubr.bf16.mxu0 %v700
      %963 = vmatmul.mubr.bf16.gmra.mrb[0].mxu0 %v515
      %v964 = vpop.f32.mrb[0].mxu0
      %v965 = vadd.f32 %v267, %v964
      %v966 = vpop.f32.mrb[0].mxu0
      %v967 = vpop.f32.mrb[0].mxu0
      %v968 = vadd.f32 %v267, %v967
      %v969 = vpop.f32.mrb[0].mxu0
      %970 = vmatprep.mubr.bf16.mxu0 %v703
      %971 = vmatmul.mubr.bf16.gmra.mrb[0].mxu0 %v517
      %v972 = vpop.f32.mrb[0].mxu0
      %v973 = vadd.f32 %v267, %v972
      %v974 = vpop.f32.mrb[0].mxu0
      %v975 = vpop.f32.mrb[0].mxu0
      %v976 = vadd.f32 %v267, %v975
      %v977 = vpop.f32.mrb[0].mxu0
      %978 = vmatprep.mubr.bf16.mxu0 %v706
      %979 = vmatmul.mubr.bf16.gmra.mrb[0].mxu0 %v519
      %v980 = vpop.f32.mrb[0].mxu0
      %v981 = vadd.f32 %v267, %v980
      %v982 = vpop.f32.mrb[0].mxu0
      %v983 = vpop.f32.mrb[0].mxu0
      %v984 = vadd.f32 %v267, %v983
      %v985 = vpop.f32.mrb[0].mxu0
      %986 = vmatprep.mubr.bf16.mxu0 %v709
      %987 = vmatmul.mubr.bf16.gmra.mrb[0].mxu0 %v521
      %v988 = vpop.f32.mrb[0].mxu0
      %v989 = vadd.f32 %v267, %v988
      %v990 = vpop.f32.mrb[0].mxu0
      %v991 = vpop.f32.mrb[0].mxu0
      %v992 = vadd.f32 %v267, %v991
      %v993 = vpop.f32.mrb[0].mxu0
      %994 = vmatprep.mubr.bf16.mxu0 %v712
      %995 = vmatmul.mubr.bf16.gmra.mrb[0].mxu0 %v523
      %v996 = vpop.f32.mrb[0].mxu0
      %v997 = vadd.f32 %v267, %v996
      %v998 = vpop.f32.mrb[0].mxu0
      %v999 = vpop.f32.mrb[0].mxu0
      %v1000 = vadd.f32 %v267, %v999
      %v1001 = vpop.f32.mrb[0].mxu0
      %1002 = vdwg.mxu0
      %v1003 = vmax.f32 %v749, 0.0
      %v1004 = vmax.f32 %v752, 0.0
      %v1005 = vmax.f32 %v757, 0.0
      %v1006 = vmax.f32 %v760, 0.0
      %v1007 = vmax.f32 %v765, 0.0
      %v1008 = vmax.f32 %v768, 0.0
      %v1009 = vmax.f32 %v773, 0.0
      %v1010 = vmax.f32 %v776, 0.0
      %v1011 = vmax.f32 %v781, 0.0
      %v1012 = vmax.f32 %v784, 0.0
      %v1013 = vmax.f32 %v789, 0.0
      %v1014 = vmax.f32 %v792, 0.0
      %v1015 = vmax.f32 %v797, 0.0
      %v1016 = vmax.f32 %v800, 0.0
      %v1017 = vmax.f32 %v805, 0.0
      %v1018 = vmax.f32 %v808, 0.0
      %v1019 = vmax.f32 %v813, 0.0
      %v1020 = vmax.f32 %v816, 0.0
      %v1021 = vmax.f32 %v821, 0.0
      %v1022 = vmax.f32 %v824, 0.0
      %v1023 = vmax.f32 %v829, 0.0
      %v1024 = vmax.f32 %v832, 0.0
      %v1025 = vmax.f32 %v837, 0.0
      %v1026 = vmax.f32 %v840, 0.0
      %v1027 = vmax.f32 %v845, 0.0
      %v1028 = vmax.f32 %v848, 0.0
      %v1029 = vmax.f32 %v853, 0.0
      %v1030 = vmax.f32 %v856, 0.0
      %v1031 = vmax.f32 %v861, 0.0
      %v1032 = vmax.f32 %v864, 0.0
      %v1033 = vmax.f32 %v869, 0.0
      %v1034 = vmax.f32 %v872, 0.0
      %v1035 = vmax.f32 %v877, 0.0
      %v1036 = vmax.f32 %v880, 0.0
      %v1037 = vmax.f32 %v885, 0.0
      %v1038 = vmax.f32 %v888, 0.0
      %v1039 = vmax.f32 %v893, 0.0
      %v1040 = vmax.f32 %v896, 0.0
      %v1041 = vmax.f32 %v901, 0.0
      %v1042 = vmax.f32 %v904, 0.0
      %v1043 = vmax.f32 %v909, 0.0
      %v1044 = vmax.f32 %v912, 0.0
      %v1045 = vmax.f32 %v917, 0.0
      %v1046 = vmax.f32 %v920, 0.0
      %v1047 = vmax.f32 %v925, 0.0
      %v1048 = vmax.f32 %v928, 0.0
      %v1049 = vmax.f32 %v933, 0.0
      %v1050 = vmax.f32 %v936, 0.0
      %v1051 = vmax.f32 %v941, 0.0
      %v1052 = vmax.f32 %v944, 0.0
      %v1053 = vmax.f32 %v949, 0.0
      %v1054 = vmax.f32 %v952, 0.0
      %v1055 = vmax.f32 %v957, 0.0
      %v1056 = vmax.f32 %v960, 0.0
      %v1057 = vmax.f32 %v965, 0.0
      %v1058 = vmax.f32 %v968, 0.0
      %v1059 = vmax.f32 %v973, 0.0
      %v1060 = vmax.f32 %v976, 0.0
      %v1061 = vmax.f32 %v981, 0.0
      %v1062 = vmax.f32 %v984, 0.0
      %v1063 = vmax.f32 %v989, 0.0
      %v1064 = vmax.f32 %v992, 0.0
      %v1065 = vmax.f32 %v997, 0.0
      %v1066 = vmax.f32 %v1000, 0.0
      %v1067 = vpack.c.bf16 %v1004, %v1003
      %v1068 = vpack.c.bf16 %v1006, %v1005
      %v1069 = vpack.c.bf16 %v1008, %v1007
      %v1070 = vpack.c.bf16 %v1010, %v1009
      %v1071 = vpack.c.bf16 %v1012, %v1011
      %v1072 = vpack.c.bf16 %v1014, %v1013
      %v1073 = vpack.c.bf16 %v1016, %v1015
      %v1074 = vpack.c.bf16 %v1018, %v1017
      %v1075 = vpack.c.bf16 %v1020, %v1019
      %v1076 = vpack.c.bf16 %v1022, %v1021
      %v1077 = vpack.c.bf16 %v1024, %v1023
      %v1078 = vpack.c.bf16 %v1026, %v1025
      %v1079 = vpack.c.bf16 %v1028, %v1027
      %v1080 = vpack.c.bf16 %v1030, %v1029
      %v1081 = vpack.c.bf16 %v1032, %v1031
      %v1082 = vpack.c.bf16 %v1034, %v1033
      %v1083 = vpack.c.bf16 %v1036, %v1035
      %v1084 = vpack.c.bf16 %v1038, %v1037
      %v1085 = vpack.c.bf16 %v1040, %v1039
      %v1086 = vpack.c.bf16 %v1042, %v1041
      %v1087 = vpack.c.bf16 %v1044, %v1043
      %v1088 = vpack.c.bf16 %v1046, %v1045
      %v1089 = vpack.c.bf16 %v1048, %v1047
      %v1090 = vpack.c.bf16 %v1050, %v1049
      %v1091 = vpack.c.bf16 %v1052, %v1051
      %v1092 = vpack.c.bf16 %v1054, %v1053
      %v1093 = vpack.c.bf16 %v1056, %v1055
      %v1094 = vpack.c.bf16 %v1058, %v1057
      %v1095 = vpack.c.bf16 %v1060, %v1059
      %v1096 = vpack.c.bf16 %v1062, %v1061
      %v1097 = vpack.c.bf16 %v1064, %v1063
      %v1098 = vpack.c.bf16 %v1066, %v1065
      %v1131 = vunpack.c.l.b16 %v1067
      %v1132 = vunpack.c.h.b16 %v1067
      %v1133 = vunpack.c.l.b16 %v1068
      %v1134 = vunpack.c.h.b16 %v1068
      %v1135 = vunpack.c.l.b16 %v1069
      %v1136 = vunpack.c.h.b16 %v1069
      %v1137 = vunpack.c.l.b16 %v1070
      %v1138 = vunpack.c.h.b16 %v1070
      %v1139 = vunpack.c.l.b16 %v1071
      %v1140 = vunpack.c.h.b16 %v1071
      %v1141 = vunpack.c.l.b16 %v1072
      %v1142 = vunpack.c.h.b16 %v1072
      %v1143 = vunpack.c.l.b16 %v1073
      %v1144 = vunpack.c.h.b16 %v1073
      %v1145 = vunpack.c.l.b16 %v1074
      %v1146 = vunpack.c.h.b16 %v1074
      %v1147 = vunpack.c.l.b16 %v1075
      %v1148 = vunpack.c.h.b16 %v1075
      %v1149 = vunpack.c.l.b16 %v1076
      %v1150 = vunpack.c.h.b16 %v1076
      %v1151 = vunpack.c.l.b16 %v1077
      %v1152 = vunpack.c.h.b16 %v1077
      %v1153 = vunpack.c.l.b16 %v1078
      %v1154 = vunpack.c.h.b16 %v1078
      %v1155 = vunpack.c.l.b16 %v1079
      %v1156 = vunpack.c.h.b16 %v1079
      %v1157 = vunpack.c.l.b16 %v1080
      %v1158 = vunpack.c.h.b16 %v1080
      %v1159 = vunpack.c.l.b16 %v1081
      %v1160 = vunpack.c.h.b16 %v1081
      %v1161 = vunpack.c.l.b16 %v1082
      %v1162 = vunpack.c.h.b16 %v1082
      %v1163 = vunpack.c.l.b16 %v1083
      %v1164 = vunpack.c.h.b16 %v1083
      %v1165 = vunpack.c.l.b16 %v1084
      %v1166 = vunpack.c.h.b16 %v1084
      %v1167 = vunpack.c.l.b16 %v1085
      %v1168 = vunpack.c.h.b16 %v1085
      %v1169 = vunpack.c.l.b16 %v1086
      %v1170 = vunpack.c.h.b16 %v1086
      %v1171 = vunpack.c.l.b16 %v1087
      %v1172 = vunpack.c.h.b16 %v1087
      %v1173 = vunpack.c.l.b16 %v1088
      %v1174 = vunpack.c.h.b16 %v1088
      %v1175 = vunpack.c.l.b16 %v1089
      %v1176 = vunpack.c.h.b16 %v1089
      %v1177 = vunpack.c.l.b16 %v1090
      %v1178 = vunpack.c.h.b16 %v1090
      %v1179 = vunpack.c.l.b16 %v1091
      %v1180 = vunpack.c.h.b16 %v1091
      %v1181 = vunpack.c.l.b16 %v1092
      %v1182 = vunpack.c.h.b16 %v1092
      %v1183 = vunpack.c.l.b16 %v1093
      %v1184 = vunpack.c.h.b16 %v1093
      %v1185 = vunpack.c.l.b16 %v1094
      %v1186 = vunpack.c.h.b16 %v1094
      %v1187 = vunpack.c.l.b16 %v1095
      %v1188 = vunpack.c.h.b16 %v1095
      %v1189 = vunpack.c.l.b16 %v1096
      %v1190 = vunpack.c.h.b16 %v1096
      %v1191 = vunpack.c.l.b16 %v1097
      %v1192 = vunpack.c.h.b16 %v1097
      %v1193 = vunpack.c.l.b16 %v1098
      %v1194 = vunpack.c.h.b16 %v1098
      %v1195 = vpack.c.b16 %v1131, %v1131
      %v1196 = vpack.c.b16 %v1132, %v1132
      %v1197 = vpack.c.b16 %v1133, %v1133
      %v1198 = vpack.c.b16 %v1134, %v1134
      %v1199 = vpack.c.b16 %v1135, %v1135
      %v1200 = vpack.c.b16 %v1136, %v1136
      %v1201 = vpack.c.b16 %v1137, %v1137
      %v1202 = vpack.c.b16 %v1138, %v1138
      %v1203 = vpack.c.b16 %v1139, %v1139
      %v1204 = vpack.c.b16 %v1140, %v1140
      %v1205 = vpack.c.b16 %v1141, %v1141
      %v1206 = vpack.c.b16 %v1142, %v1142
      %v1207 = vpack.c.b16 %v1143, %v1143
      %v1208 = vpack.c.b16 %v1144, %v1144
      %v1209 = vpack.c.b16 %v1145, %v1145
      %v1210 = vpack.c.b16 %v1146, %v1146
      %v1211 = vpack.c.b16 %v1147, %v1147
      %v1212 = vpack.c.b16 %v1148, %v1148
      %v1213 = vpack.c.b16 %v1149, %v1149
      %v1214 = vpack.c.b16 %v1150, %v1150
      %v1215 = vpack.c.b16 %v1151, %v1151
      %v1216 = vpack.c.b16 %v1152, %v1152
      %v1217 = vpack.c.b16 %v1153, %v1153
      %v1218 = vpack.c.b16 %v1154, %v1154
      %v1219 = vpack.c.b16 %v1155, %v1155
      %v1220 = vpack.c.b16 %v1156, %v1156
      %v1221 = vpack.c.b16 %v1157, %v1157
      %v1222 = vpack.c.b16 %v1158, %v1158
      %v1223 = vpack.c.b16 %v1159, %v1159
      %v1224 = vpack.c.b16 %v1160, %v1160
      %v1225 = vpack.c.b16 %v1161, %v1161
      %v1226 = vpack.c.b16 %v1162, %v1162
      %v1227 = vpack.c.b16 %v1163, %v1163
      %v1228 = vpack.c.b16 %v1164, %v1164
      %v1229 = vpack.c.b16 %v1165, %v1165
      %v1230 = vpack.c.b16 %v1166, %v1166
      %v1231 = vpack.c.b16 %v1167, %v1167
      %v1232 = vpack.c.b16 %v1168, %v1168
      %v1233 = vpack.c.b16 %v1169, %v1169
      %v1234 = vpack.c.b16 %v1170, %v1170
      %v1235 = vpack.c.b16 %v1171, %v1171
      %v1236 = vpack.c.b16 %v1172, %v1172
      %v1237 = vpack.c.b16 %v1173, %v1173
      %v1238 = vpack.c.b16 %v1174, %v1174
      %v1239 = vpack.c.b16 %v1175, %v1175
      %v1240 = vpack.c.b16 %v1176, %v1176
      %v1241 = vpack.c.b16 %v1177, %v1177
      %v1242 = vpack.c.b16 %v1178, %v1178
      %v1243 = vpack.c.b16 %v1179, %v1179
      %v1244 = vpack.c.b16 %v1180, %v1180
      %v1245 = vpack.c.b16 %v1181, %v1181
      %v1246 = vpack.c.b16 %v1182, %v1182
      %v1247 = vpack.c.b16 %v1183, %v1183
      %v1248 = vpack.c.b16 %v1184, %v1184
      %v1249 = vpack.c.b16 %v1185, %v1185
      %v1250 = vpack.c.b16 %v1186, %v1186
      %v1251 = vpack.c.b16 %v1187, %v1187
      %v1252 = vpack.c.b16 %v1188, %v1188
      %v1253 = vpack.c.b16 %v1189, %v1189
      %v1254 = vpack.c.b16 %v1190, %v1190
      %v1255 = vpack.c.b16 %v1191, %v1191
      %v1256 = vpack.c.b16 %v1192, %v1192
      %v1257 = vpack.c.b16 %v1193, %v1193
      %v1258 = vpack.c.b16 %v1194, %v1194
      %1323 = vst [vmem:[%s175] sm:$0xf] %v1195
      %1324 = vst [vmem:[%s175 + $0x4] sm:$0xf] %v1196
      %1325 = vst [vmem:[%s175 + $0x8] sm:$0xf] %v1197
      %1326 = vst [vmem:[%s175 + $0xc] sm:$0xf] %v1198
      %1327 = vst [vmem:[%s175 + $0x10] sm:$0xf] %v1199
      %1328 = vst [vmem:[%s175 + $0x14] sm:$0xf] %v1200
      %1329 = vst [vmem:[%s175 + $0x18] sm:$0xf] %v1201
      %1330 = vst [vmem:[%s175 + $0x1c] sm:$0xf] %v1202
      %1331 = vst [vmem:[%s175 + $0x20] sm:$0xf] %v1203
      %1332 = vst [vmem:[%s175 + $0x24] sm:$0xf] %v1204
      %1333 = vst [vmem:[%s175 + $0x28] sm:$0xf] %v1205
      %1334 = vst [vmem:[%s175 + $0x2c] sm:$0xf] %v1206
      %1335 = vst [vmem:[%s175 + $0x30] sm:$0xf] %v1207
      %1336 = vst [vmem:[%s175 + $0x34] sm:$0xf] %v1208
      %1337 = vst [vmem:[%s175 + $0x38] sm:$0xf] %v1209
      %1338 = vst [vmem:[%s175 + $0x3c] sm:$0xf] %v1210
      %1339 = vst [vmem:[%s175 + $0x40] sm:$0xf] %v1211
      %1340 = vst [vmem:[%s175 + $0x44] sm:$0xf] %v1212
      %1341 = vst [vmem:[%s175 + $0x48] sm:$0xf] %v1213
      %1342 = vst [vmem:[%s175 + $0x4c] sm:$0xf] %v1214
      %1343 = vst [vmem:[%s175 + $0x50] sm:$0xf] %v1215
      %1344 = vst [vmem:[%s175 + $0x54] sm:$0xf] %v1216
      %1345 = vst [vmem:[%s175 + $0x58] sm:$0xf] %v1217
      %1346 = vst [vmem:[%s175 + $0x5c] sm:$0xf] %v1218
      %1347 = vst [vmem:[%s175 + $0x60] sm:$0xf] %v1219
      %1348 = vst [vmem:[%s175 + $0x64] sm:$0xf] %v1220
      %1349 = vst [vmem:[%s175 + $0x68] sm:$0xf] %v1221
      %1350 = vst [vmem:[%s175 + $0x6c] sm:$0xf] %v1222
      %1351 = vst [vmem:[%s175 + $0x70] sm:$0xf] %v1223
      %1352 = vst [vmem:[%s175 + $0x74] sm:$0xf] %v1224
      %1353 = vst [vmem:[%s175 + $0x78] sm:$0xf] %v1225
      %1354 = vst [vmem:[%s175 + $0x7c] sm:$0xf] %v1226
      %1355 = vst [vmem:[%s175 + $0x80] sm:$0xf] %v1227
      %1356 = vst [vmem:[%s175 + $0x84] sm:$0xf] %v1228
      %1357 = vst [vmem:[%s175 + $0x88] sm:$0xf] %v1229
      %1358 = vst [vmem:[%s175 + $0x8c] sm:$0xf] %v1230
      %1359 = vst [vmem:[%s175 + $0x90] sm:$0xf] %v1231
      %1360 = vst [vmem:[%s175 + $0x94] sm:$0xf] %v1232
      %1361 = vst [vmem:[%s175 + $0x98] sm:$0xf] %v1233
      %1362 = vst [vmem:[%s175 + $0x9c] sm:$0xf] %v1234
      %1363 = vst [vmem:[%s175 + $0xa0] sm:$0xf] %v1235
      %1364 = vst [vmem:[%s175 + $0xa4] sm:$0xf] %v1236
      %1365 = vst [vmem:[%s175 + $0xa8] sm:$0xf] %v1237
      %1366 = vst [vmem:[%s175 + $0xac] sm:$0xf] %v1238
      %1367 = vst [vmem:[%s175 + $0xb0] sm:$0xf] %v1239
      %1368 = vst [vmem:[%s175 + $0xb4] sm:$0xf] %v1240
      %1369 = vst [vmem:[%s175 + $0xb8] sm:$0xf] %v1241
      %1370 = vst [vmem:[%s175 + $0xbc] sm:$0xf] %v1242
      %1371 = vst [vmem:[%s175 + $0xc0] sm:$0xf] %v1243
      %1372 = vst [vmem:[%s175 + $0xc4] sm:$0xf] %v1244
      %1373 = vst [vmem:[%s175 + $0xc8] sm:$0xf] %v1245
      %1374 = vst [vmem:[%s175 + $0xcc] sm:$0xf] %v1246
      %1375 = vst [vmem:[%s175 + $0xd0] sm:$0xf] %v1247
      %1376 = vst [vmem:[%s175 + $0xd4] sm:$0xf] %v1248
      %1377 = vst [vmem:[%s175 + $0xd8] sm:$0xf] %v1249
      %1378 = vst [vmem:[%s175 + $0xdc] sm:$0xf] %v1250
      %1379 = vst [vmem:[%s175 + $0xe0] sm:$0xf] %v1251
      %1380 = vst [vmem:[%s175 + $0xe4] sm:$0xf] %v1252
      %1381 = vst [vmem:[%s175 + $0xe8] sm:$0xf] %v1253
      %1382 = vst [vmem:[%s175 + $0xec] sm:$0xf] %v1254
      %1383 = vst [vmem:[%s175 + $0xf0] sm:$0xf] %v1255
      %1384 = vst [vmem:[%s175 + $0xf4] sm:$0xf] %v1256
      %1385 = vst [vmem:[%s175 + $0xf8] sm:$0xf] %v1257
      %1386 = vst [vmem:[%s175 + $0xfc] sm:$0xf] %v1258
      %s1387 = smul.u32 64, %s14
      %p1388 = scmp.lt.s32.totalorder %s1387, 255
      %s1389 = scalar_select %p1388, %s1387, 255
      %s1390 = smul.addr %s1389, 4
      %s1391 = scalar_lea.vmem %s3, %s1390
      // Predicated region
      $region33: #{fused_matmul.1} parent=31 // pred_check
        %p1392 = pneg %p100
      $region34: #{fused_matmul.1} parent=31 // pred_check_branch
        %1394 = sbr.rel (%p1392) target = $region36
      $region35: #{fused_matmul.1} parent=31 // pred_region
        %s1395 = smul.u32 64, %s14
      $region36: #{fused_matmul.1} parent=31 // pred_fallthru
        _
    $region32: #{fused_matmul.1} parent=5 // pred_fallthru
      _
    %p1396 = scmp.le.s32.totalorder 2, %s9
    // Predicated region
    $region37: #{fused_matmul.1} parent=5 // pred_check
      %p1397 = pneg %p1396
    $region38: #{fused_matmul.1} parent=5 // pred_check_branch
      %1399 = sbr.rel (%p1397) target = $region40
    $region39: #{fused_matmul.1} parent=5 // pred_region
      %s1400 = ssub.s32 %s9, 2
      // Predicated region
      $region41: #{fused_matmul.1} parent=39 // pred_check
        %p1401 = pneg %p106
      $region42: #{fused_matmul.1} parent=39 // pred_check_branch
        %1403 = sbr.rel (%p1401) target = $region44
      $region43: #{fused_matmul.1} parent=39 // pred_region
        %s1404 = smul.u32 64, %s15
        %p1405 = scmp.lt.s32.totalorder %s1404, 255
        %s1406 = scalar_select %p1405, %s1404, 255
        %s1407 = smul.addr %s1406, 4
        %s1408 = scalar_lea.vmem %s3, %s1407
      $region44: #{fused_matmul.1} parent=39 // pred_fallthru
        _
    $region40: #{fused_matmul.1} parent=5 // pred_fallthru
      _
  $region6: #{fused_matmul.1} parent=0 // loop_footer
    %s13 = sadd.s32 1, %s9
  $region7: #{fused_matmul.1} parent=0 // loop_footer_branch
    %8 = sbr.rel target = $region3
  $region8: #{fused_matmul.1} parent=0 // loop_exit
    _

</llo_original>
